<compile_context>
chip_gen: v5e
topology: v5e:2x2
jax: 0.10.0
libtpu: 0.0.40
codegen_flags: <defaults>
</compile_context>

<pallas_src>
import jax
import jax.numpy as jnp
from jax.experimental import pallas as pl
from jax.experimental.pallas import tpu as pltpu

BN_EPS = 1e-5
LANE = 128


def _mlp_projector_kernel(x_ref, w1_ref, b1_ref, g1_ref, bt1_ref,
                          w2_ref, b2_ref, g2_ref, bt2_ref, o_ref, acc_ref):
    k = pl.program_id(1)

    @pl.when(k == 0)
    def _():
        acc_ref[...] = jnp.zeros_like(acc_ref)

    # ---- fc1 column tile (bf16 MXU, f32 accumulate) + bias + ReLU ----
    h1 = jnp.dot(x_ref[...], w1_ref[...], preferred_element_type=jnp.float32)
    h1 = jnp.maximum(h1 + b1_ref[...], 0.0)

    # ---- BN1 (batch stats over the full, untiled batch axis), folded to FMA ----
    mean1 = jnp.mean(h1, axis=0, keepdims=True)
    msq1 = jnp.mean(h1 * h1, axis=0, keepdims=True)
    var1 = msq1 - mean1 * mean1
    scale1 = g1_ref[...] * jax.lax.rsqrt(var1 + BN_EPS)
    shift1 = bt1_ref[...] - mean1 * scale1
    h1 = h1 * scale1 + shift1

    # ---- partial fc2: accumulate this h1-tile's contribution ----
    acc_ref[...] += jnp.dot(h1.astype(jnp.bfloat16), w2_ref[...],
                            preferred_element_type=jnp.float32)

    # ---- finalize: bias2 + ReLU + BN2 + sigmoid ----
    @pl.when(k == pl.num_programs(1) - 1)
    def _():
        h2 = jnp.maximum(acc_ref[...] + b2_ref[...], 0.0)
        mean2 = jnp.mean(h2, axis=0, keepdims=True)
        msq2 = jnp.mean(h2 * h2, axis=0, keepdims=True)
        var2 = msq2 - mean2 * mean2
        scale2 = g2_ref[...] * jax.lax.rsqrt(var2 + BN_EPS)
        shift2 = bt2_ref[...] - mean2 * scale2
        h2 = h2 * scale2 + shift2
        e = jnp.exp(-h2)                                   # EUP
        o_ref[...] = pl.reciprocal(1.0 + e, approx=True).astype(o_ref.dtype)


def _round_up(n, m):
    return ((n + m - 1) // m) * m


def mlp_projector(x, params):
    """x: (B, in_dim*map_nums) float32. Returns (B, out_dim) float32."""
    B, in_features = x.shape
    out_dim = params["w1"].shape[1]

    # Pad the feature dim to a lane-dense multiple of 128.
    Dp = max(_round_up(out_dim, LANE), LANE)
    pad = Dp - out_dim
    tile = 256 if Dp % 256 == 0 else 128
    Jn = Dp // tile      # output-feature tiles (parallel)
    Kk = Dp // tile      # h1-feature tiles (reduction)

    def pad_cols(a):
        return jnp.pad(a, ((0, 0), (0, pad))) if pad else a

    # bf16 weights / activations for the MXU; f32 for BN params & biases.
    xb = x.astype(jnp.bfloat16)
    w1 = pad_cols(params["w1"]).astype(jnp.bfloat16)
    w2 = params["w2"]
    if pad:
        w2 = jnp.pad(w2, ((0, pad), (0, pad)))
    w2 = w2.astype(jnp.bfloat16)
    b1, g1, bt1 = pad_cols(params["b1"]), pad_cols(params["g1"]), pad_cols(params["bt1"])
    b2, g2, bt2 = pad_cols(params["b2"]), pad_cols(params["g2"]), pad_cols(params["bt2"])

    grid_spec = pltpu.PrefetchScalarGridSpec(
        num_scalar_prefetch=0,
        grid=(Jn, Kk),
        in_specs=[
            pl.BlockSpec((B, in_features), lambda j, k: (0, 0)),     # x (bf16)
            pl.BlockSpec((in_features, tile), lambda j, k: (0, k)),  # w1 col tile
            pl.BlockSpec((1, tile), lambda j, k: (0, k)),            # b1
            pl.BlockSpec((1, tile), lambda j, k: (0, k)),            # g1
            pl.BlockSpec((1, tile), lambda j, k: (0, k)),            # bt1
            pl.BlockSpec((tile, tile), lambda j, k: (k, j)),         # w2 tile
            pl.BlockSpec((1, tile), lambda j, k: (0, j)),            # b2
            pl.BlockSpec((1, tile), lambda j, k: (0, j)),            # g2
            pl.BlockSpec((1, tile), lambda j, k: (0, j)),            # bt2
        ],
        out_specs=pl.BlockSpec((B, tile), lambda j, k: (0, j)),
        scratch_shapes=[pltpu.VMEM((B, tile), jnp.float32)],
    )

    out = pl.pallas_call(
        _mlp_projector_kernel,
        out_shape=jax.ShapeDtypeStruct((B, Dp), jnp.float32),
        grid_spec=grid_spec,
        compiler_params=pltpu.CompilerParams(
            dimension_semantics=("parallel", "arbitrary"),
            vmem_limit_bytes=48 * 1024 * 1024,   # within v7x's 64 MiB physical VMEM
        ),
    )(xb, w1, b1, g1, bt1, w2, b2, g2, bt2)

    return out[:, :out_dim]


def init_params(key, in_dim, map_nums, out_dim):
    in_features = in_dim * map_nums
    k1, k2, k3, k4 = jax.random.split(key, 4)
    # Linear weights stored transposed relative to PyTorch: (in, out).
    bound1 = 1.0 / jnp.sqrt(in_features)
    bound2 = 1.0 / jnp.sqrt(out_dim)
    return {
        "w1": jax.random.uniform(k1, (in_features, out_dim), jnp.float32, -bound1, bound1),
        "b1": jax.random.uniform(k2, (1, out_dim), jnp.float32, -bound1, bound1),
        "g1": jnp.ones((1, out_dim), jnp.float32),    # bn1.weight
        "bt1": jnp.zeros((1, out_dim), jnp.float32),  # bn1.bias
        "w2": jax.random.uniform(k3, (out_dim, out_dim), jnp.float32, -bound2, bound2),
        "b2": jax.random.uniform(k4, (1, out_dim), jnp.float32, -bound2, bound2),
        "g2": jnp.ones((1, out_dim), jnp.float32),    # bn2.weight
        "bt2": jnp.zeros((1, out_dim), jnp.float32),  # bn2.bias
    }


def _reference(x, p):
    """Matched-precision JAX reference (bf16 matmul inputs, f32 accumulation)."""
    def bn(h, g, bt):
        m = jnp.mean(h, 0, keepdims=True)
        v = jnp.mean(h * h, 0, keepdims=True) - m * m
        return (h - m) * jax.lax.rsqrt(v + BN_EPS) * g + bt

    xb = x.astype(jnp.bfloat16)
    w1 = p["w1"].astype(jnp.bfloat16)
    w2 = p["w2"].astype(jnp.bfloat16)

    h = jnp.dot(xb, w1, preferred_element_type=jnp.float32) + p["b1"]
    h = bn(jnp.maximum(h, 0.0), p["g1"], p["bt1"])
    h = jnp.dot(h.astype(jnp.bfloat16), w2, preferred_element_type=jnp.float32) + p["b2"]
    h = bn(jnp.maximum(h, 0.0), p["g2"], p["bt2"])
    return jax.nn.sigmoid(h)


if __name__ == "__main__":
    key = jax.random.PRNGKey(0)
    in_dim, map_nums, out_dim, batch = 4, 8, 32, 8
    kx, kp = jax.random.split(key)
    x = jax.random.normal(kx, (batch, in_dim * map_nums), jnp.float32)
    params = init_params(kp, in_dim, map_nums, out_dim)

    out = mlp_projector(x, params)
    out = jax.block_until_ready(out)

    ref = _reference(x, params)
    assert out.shape == (batch, out_dim)
    assert jnp.allclose(out, ref, atol=1e-2, rtol=1e-2), "mismatch vs JAX reference"
    print("KERNEL_OK")
</pallas_src>

<mosaic_0001>
module attributes {stable_mosaic.version = 11 : i64} {
  func.func @_mlp_projector_kernel(%arg0: i32, %arg1: i32, %arg2: memref<8x32xbf16, #tpu.memory_space<vmem>>, %arg3: memref<32x128xbf16, #tpu.memory_space<vmem>>, %arg4: memref<1x128xf32, #tpu.memory_space<vmem>>, %arg5: memref<1x128xf32, #tpu.memory_space<vmem>>, %arg6: memref<1x128xf32, #tpu.memory_space<vmem>>, %arg7: memref<128x128xbf16, #tpu.memory_space<vmem>>, %arg8: memref<1x128xf32, #tpu.memory_space<vmem>>, %arg9: memref<1x128xf32, #tpu.memory_space<vmem>>, %arg10: memref<1x128xf32, #tpu.memory_space<vmem>>, %arg11: memref<8x128xf32, #tpu.memory_space<vmem>>, %arg12: memref<8x128xf32, #tpu.memory_space<vmem>>) attributes {dimension_semantics = [#tpu.dimension_semantics<parallel>, #tpu.dimension_semantics<arbitrary>], iteration_bounds = array<i64: 1, 1>, scalar_prefetch = 0 : i64, scratch_operands = 1 : i64, tpu.core_type = #tpu.core_type<tc>, window_params = [{pipeline_mode = #tpu.pipeline_mode<synchronous>, transform_indices = @transform_0, window_bounds = array<i64: 8, 32>}, {transform_indices = @transform_1, window_bounds = array<i64: 32, 128>}, {transform_indices = @transform_2, window_bounds = array<i64: 1, 128>}, {transform_indices = @transform_3, window_bounds = array<i64: 1, 128>}, {transform_indices = @transform_4, window_bounds = array<i64: 1, 128>}, {transform_indices = @transform_5, window_bounds = array<i64: 128, 128>}, {transform_indices = @transform_6, window_bounds = array<i64: 1, 128>}, {transform_indices = @transform_7, window_bounds = array<i64: 1, 128>}, {transform_indices = @transform_8, window_bounds = array<i64: 1, 128>}, {transform_indices = @transform_9, window_bounds = array<i64: 8, 128>}]} {
    %c0_i32 = arith.constant 0 : i32
    %0 = arith.cmpi eq, %arg1, %c0_i32 : i32
    %1 = arith.extui %0 : i1 to i32
    %c0_i32_0 = arith.constant 0 : i32
    %2 = arith.cmpi ne, %1, %c0_i32_0 : i32
    scf.if %2 {
      %cst_25 = arith.constant 0.000000e+00 : f32
      %43 = vector.broadcast %cst_25 : f32 to vector<8x128xf32>
      %c0_26 = arith.constant 0 : index
      %c0_27 = arith.constant 0 : index
      %44 = vector.load %arg12[%c0_26, %c0_27] : memref<8x128xf32, #tpu.memory_space<vmem>>, vector<8x128xf32>
      tpu.vector_store %arg12[%c0_26, %c0_27], %43 {strides = array<i32>} : memref<8x128xf32, #tpu.memory_space<vmem>>, vector<8x128xf32>,
    } else {
    }
    %c0 = arith.constant 0 : index
    %c0_1 = arith.constant 0 : index
    %3 = vector.load %arg2[%c0, %c0_1] : memref<8x32xbf16, #tpu.memory_space<vmem>>, vector<8x32xbf16>
    %c0_2 = arith.constant 0 : index
    %c0_3 = arith.constant 0 : index
    %4 = vector.load %arg3[%c0_2, %c0_3] : memref<32x128xbf16, #tpu.memory_space<vmem>>, vector<32x128xbf16>
    %cst = arith.constant dense<0.000000e+00> : vector<8x128xf32>
    %5 = tpu.matmul %3, %4, %cst {dimension_numbers = #tpu.dot_dimension_numbers<[1], [0], [0], [1], [0, 0, 1, 1], [], []>} : vector<8x32xbf16>, vector<32x128xbf16>, vector<8x128xf32> -> vector<8x128xf32>
    %c0_4 = arith.constant 0 : index
    %c0_5 = arith.constant 0 : index
    %6 = vector.load %arg4[%c0_4, %c0_5] : memref<1x128xf32, #tpu.memory_space<vmem>>, vector<1x128xf32>
    %7 = vector.broadcast %6 : vector<1x128xf32> to vector<8x128xf32>
    %8 = arith.addf %5, %7 : vector<8x128xf32>
    %cst_6 = arith.constant 0.000000e+00 : f32
    %9 = vector.broadcast %cst_6 : f32 to vector<8x128xf32>
    %10 = arith.maximumf %8, %9 : vector<8x128xf32>
    %cst_7 = arith.constant dense<0.000000e+00> : vector<128xf32>
    %11 = vector.multi_reduction <add>, %10, %cst_7 [0] : vector<8x128xf32> to vector<128xf32>
    %12 = vector.shape_cast %11 : vector<128xf32> to vector<1x128xf32>
    %cst_8 = arith.constant 8.000000e+00 : f32
    %13 = vector.broadcast %cst_8 : f32 to vector<1x128xf32>
    %14 = arith.divf %12, %13 : vector<1x128xf32>
    %15 = arith.mulf %10, %10 : vector<8x128xf32>
    %cst_9 = arith.constant dense<0.000000e+00> : vector<128xf32>
    %16 = vector.multi_reduction <add>, %15, %cst_9 [0] : vector<8x128xf32> to vector<128xf32>
    %17 = vector.shape_cast %16 : vector<128xf32> to vector<1x128xf32>
    %cst_10 = arith.constant 8.000000e+00 : f32
    %18 = vector.broadcast %cst_10 : f32 to vector<1x128xf32>
    %19 = arith.divf %17, %18 : vector<1x128xf32>
    %20 = arith.mulf %14, %14 : vector<1x128xf32>
    %21 = arith.subf %19, %20 : vector<1x128xf32>
    %c0_11 = arith.constant 0 : index
    %c0_12 = arith.constant 0 : index
    %22 = vector.load %arg5[%c0_11, %c0_12] : memref<1x128xf32, #tpu.memory_space<vmem>>, vector<1x128xf32>
    %cst_13 = arith.constant 9.99999974E-6 : f32
    %23 = vector.broadcast %cst_13 : f32 to vector<1x128xf32>
    %24 = arith.addf %21, %23 : vector<1x128xf32>
    %25 = math.rsqrt %24 : vector<1x128xf32>
    %26 = arith.mulf %22, %25 : vector<1x128xf32>
    %c0_14 = arith.constant 0 : index
    %c0_15 = arith.constant 0 : index
    %27 = vector.load %arg6[%c0_14, %c0_15] : memref<1x128xf32, #tpu.memory_space<vmem>>, vector<1x128xf32>
    %28 = arith.mulf %14, %26 : vector<1x128xf32>
    %29 = arith.subf %27, %28 : vector<1x128xf32>
    %30 = vector.broadcast %26 : vector<1x128xf32> to vector<8x128xf32>
    %31 = arith.mulf %10, %30 : vector<8x128xf32>
    %32 = vector.broadcast %29 : vector<1x128xf32> to vector<8x128xf32>
    %33 = arith.addf %31, %32 : vector<8x128xf32>
    %c0_16 = arith.constant 0 : index
    %c0_17 = arith.constant 0 : index
    %34 = vector.load %arg12[%c0_16, %c0_17] : memref<8x128xf32, #tpu.memory_space<vmem>>, vector<8x128xf32>
    %35 = arith.truncf %33 : vector<8x128xf32> to vector<8x128xbf16>
    %c0_18 = arith.constant 0 : index
    %c0_19 = arith.constant 0 : index
    %36 = vector.load %arg7[%c0_18, %c0_19] : memref<128x128xbf16, #tpu.memory_space<vmem>>, vector<128x128xbf16>
    %cst_20 = arith.constant dense<0.000000e+00> : vector<8x128xf32>
    %37 = tpu.matmul %35, %36, %cst_20 {dimension_numbers = #tpu.dot_dimension_numbers<[1], [0], [0], [1], [0, 0, 1, 1], [], []>} : vector<8x128xbf16>, vector<128x128xbf16>, vector<8x128xf32> -> vector<8x128xf32>
    %38 = arith.addf %34, %37 : vector<8x128xf32>
    %c0_21 = arith.constant 0 : index
    %c0_22 = arith.constant 0 : index
    %39 = vector.load %arg12[%c0_21, %c0_22] : memref<8x128xf32, #tpu.memory_space<vmem>>, vector<8x128xf32>
    tpu.vector_store %arg12[%c0_21, %c0_22], %38 {strides = array<i32>} : memref<8x128xf32, #tpu.memory_space<vmem>>, vector<8x128xf32>,
    %c0_i32_23 = arith.constant 0 : i32
    %40 = arith.cmpi eq, %arg1, %c0_i32_23 : i32
    %41 = arith.extui %40 : i1 to i32
    %c0_i32_24 = arith.constant 0 : i32
    %42 = arith.cmpi ne, %41, %c0_i32_24 : i32
    scf.if %42 {
      %c0_25 = arith.constant 0 : index
      %c0_26 = arith.constant 0 : index
      %43 = vector.load %arg12[%c0_25, %c0_26] : memref<8x128xf32, #tpu.memory_space<vmem>>, vector<8x128xf32>
      %c0_27 = arith.constant 0 : index
      %c0_28 = arith.constant 0 : index
      %44 = vector.load %arg8[%c0_27, %c0_28] : memref<1x128xf32, #tpu.memory_space<vmem>>, vector<1x128xf32>
      %45 = vector.broadcast %44 : vector<1x128xf32> to vector<8x128xf32>
      %46 = arith.addf %43, %45 : vector<8x128xf32>
      %cst_29 = arith.constant 0.000000e+00 : f32
      %47 = vector.broadcast %cst_29 : f32 to vector<8x128xf32>
      %48 = arith.maximumf %46, %47 : vector<8x128xf32>
      %cst_30 = arith.constant dense<0.000000e+00> : vector<128xf32>
      %49 = vector.multi_reduction <add>, %48, %cst_30 [0] : vector<8x128xf32> to vector<128xf32>
      %50 = vector.shape_cast %49 : vector<128xf32> to vector<1x128xf32>
      %cst_31 = arith.constant 8.000000e+00 : f32
      %51 = vector.broadcast %cst_31 : f32 to vector<1x128xf32>
      %52 = arith.divf %50, %51 : vector<1x128xf32>
      %53 = arith.mulf %48, %48 : vector<8x128xf32>
      %cst_32 = arith.constant dense<0.000000e+00> : vector<128xf32>
      %54 = vector.multi_reduction <add>, %53, %cst_32 [0] : vector<8x128xf32> to vector<128xf32>
      %55 = vector.shape_cast %54 : vector<128xf32> to vector<1x128xf32>
      %cst_33 = arith.constant 8.000000e+00 : f32
      %56 = vector.broadcast %cst_33 : f32 to vector<1x128xf32>
      %57 = arith.divf %55, %56 : vector<1x128xf32>
      %58 = arith.mulf %52, %52 : vector<1x128xf32>
      %59 = arith.subf %57, %58 : vector<1x128xf32>
      %c0_34 = arith.constant 0 : index
      %c0_35 = arith.constant 0 : index
      %60 = vector.load %arg9[%c0_34, %c0_35] : memref<1x128xf32, #tpu.memory_space<vmem>>, vector<1x128xf32>
      %cst_36 = arith.constant 9.99999974E-6 : f32
      %61 = vector.broadcast %cst_36 : f32 to vector<1x128xf32>
      %62 = arith.addf %59, %61 : vector<1x128xf32>
      %63 = math.rsqrt %62 : vector<1x128xf32>
      %64 = arith.mulf %60, %63 : vector<1x128xf32>
      %c0_37 = arith.constant 0 : index
      %c0_38 = arith.constant 0 : index
      %65 = vector.load %arg10[%c0_37, %c0_38] : memref<1x128xf32, #tpu.memory_space<vmem>>, vector<1x128xf32>
      %66 = arith.mulf %52, %64 : vector<1x128xf32>
      %67 = arith.subf %65, %66 : vector<1x128xf32>
      %68 = vector.broadcast %64 : vector<1x128xf32> to vector<8x128xf32>
      %69 = arith.mulf %48, %68 : vector<8x128xf32>
      %70 = vector.broadcast %67 : vector<1x128xf32> to vector<8x128xf32>
      %71 = arith.addf %69, %70 : vector<8x128xf32>
      %cst_39 = arith.constant 0.000000e+00 : f32
      %72 = vector.broadcast %cst_39 : f32 to vector<8x128xf32>
      %73 = arith.subf %72, %71 : vector<8x128xf32>
      %74 = math.exp %73 : vector<8x128xf32>
      %cst_40 = arith.constant 1.000000e+00 : f32
      %75 = vector.broadcast %cst_40 : f32 to vector<8x128xf32>
      %76 = arith.addf %75, %74 : vector<8x128xf32>
      %77 = tpu.reciprocal %76 {approx = true} : vector<8x128xf32> -> vector<8x128xf32>
      %c0_41 = arith.constant 0 : index
      %c0_42 = arith.constant 0 : index
      %78 = vector.load %arg11[%c0_41, %c0_42] : memref<8x128xf32, #tpu.memory_space<vmem>>, vector<8x128xf32>
      tpu.vector_store %arg11[%c0_41, %c0_42], %77 {strides = array<i32>} : memref<8x128xf32, #tpu.memory_space<vmem>>, vector<8x128xf32>,
    } else {
    }
    return
  }
  func.func @transform_0(%arg0: i32, %arg1: i32) -> (i32, i32) {
    %c0_i32 = arith.constant 0 : i32
    %c0_i32_0 = arith.constant 0 : i32
    %c0_i32_1 = arith.constant 0 : i32
    return %c0_i32, %c0_i32_0 : i32, i32
  }
  func.func @transform_1(%arg0: i32, %arg1: i32) -> (i32, i32) {
    %c0_i32 = arith.constant 0 : i32
    %c0_i32_0 = arith.constant 0 : i32
    return %c0_i32, %arg1 : i32, i32
  }
  func.func @transform_2(%arg0: i32, %arg1: i32) -> (i32, i32) {
    %c0_i32 = arith.constant 0 : i32
    %c0_i32_0 = arith.constant 0 : i32
    return %c0_i32, %arg1 : i32, i32
  }
  func.func @transform_3(%arg0: i32, %arg1: i32) -> (i32, i32) {
    %c0_i32 = arith.constant 0 : i32
    %c0_i32_0 = arith.constant 0 : i32
    return %c0_i32, %arg1 : i32, i32
  }
  func.func @transform_4(%arg0: i32, %arg1: i32) -> (i32, i32) {
    %c0_i32 = arith.constant 0 : i32
    %c0_i32_0 = arith.constant 0 : i32
    return %c0_i32, %arg1 : i32, i32
  }
  func.func @transform_5(%arg0: i32, %arg1: i32) -> (i32, i32) {
    %c0_i32 = arith.constant 0 : i32
    return %arg1, %arg0 : i32, i32
  }
  func.func @transform_6(%arg0: i32, %arg1: i32) -> (i32, i32) {
    %c0_i32 = arith.constant 0 : i32
    %c0_i32_0 = arith.constant 0 : i32
    return %c0_i32, %arg0 : i32, i32
  }
  func.func @transform_7(%arg0: i32, %arg1: i32) -> (i32, i32) {
    %c0_i32 = arith.constant 0 : i32
    %c0_i32_0 = arith.constant 0 : i32
    return %c0_i32, %arg0 : i32, i32
  }
  func.func @transform_8(%arg0: i32, %arg1: i32) -> (i32, i32) {
    %c0_i32 = arith.constant 0 : i32
    %c0_i32_0 = arith.constant 0 : i32
    return %c0_i32, %arg0 : i32, i32
  }
  func.func @transform_9(%arg0: i32, %arg1: i32) -> (i32, i32) {
    %c0_i32 = arith.constant 0 : i32
    %c0_i32_0 = arith.constant 0 : i32
    return %c0_i32, %arg0 : i32, i32
  }
}

</mosaic_0001>

<llo_original>
// kernel: tpu_custom_call.1
$region0: #{tpu_custom_call.1}
  #allocation0 [shape = 'u32[]', space=smem, size = 0x4, offset = 0x4, fixed_abs, tag = 'smem constant byte address 0x4 - core index']
  #allocation1 [shape = 'u32[72,128]{1,0:T(1,128)}', space=vmem, size = 0x9000, scoped, tag = 'internal scratch']
  #allocation2 [shape = 'f32[8,128]{1,0:T(8,128)}', space=vmem, size = 0x1000, scoped, tag = 'scratch operand']
  %s0 = inlined_call_operand.hbm [shape: bf16[8,32], index: 0, kind: input, shape index: {}]
  %s1 = inlined_call_operand.hbm [shape: bf16[32,128], index: 1, kind: input, shape index: {}]
  %s2 = inlined_call_operand.vmem [shape: f32[1,128], index: 2, kind: input, shape index: {}]
  %s3 = inlined_call_operand.vmem [shape: f32[1,128], index: 3, kind: input, shape index: {}]
  %s4 = inlined_call_operand.vmem [shape: f32[1,128], index: 4, kind: input, shape index: {}]
  %s5 = inlined_call_operand.hbm [shape: bf16[128,128], index: 5, kind: input, shape index: {}]
  %s6 = inlined_call_operand.vmem [shape: f32[1,128], index: 6, kind: input, shape index: {}]
  %s7 = inlined_call_operand.vmem [shape: f32[1,128], index: 7, kind: input, shape index: {}]
  %s8 = inlined_call_operand.vmem [shape: f32[1,128], index: 8, kind: input, shape index: {}]
  %s9 = inlined_call_operand.hbm [shape: f32[8,128], index: 9, kind: output, shape index: {}]
  %s10 = sld [smem:[#allocation0]]
  $region66: #{tpu_custom_call.1} parent=0
    _
  %s12 = ssub.s32 1, %s10
  %s13 = scalar_select 0, %s12, %s10
  $region1: #{tpu_custom_call.1} parent=0
    #allocation3 [shape = 'u8[2048]{0}', space=vmem, size = 0x800, scoped, tag = 'input window, operand 0, single buffered']
    #allocation4 [shape = 's32[1]{0}', space=sflag, size = 0x4, scoped, tag = 'scoped memory for tpu_custom_call.1']
    #allocation5 [shape = 's32[1]{0}', space=sflag, size = 0x4, scoped, tag = 'scoped memory for tpu_custom_call.1']
    #allocation6 [shape = 'u8[8192]{0}', space=vmem, size = 0x2000, scoped, tag = 'input window, operand 1, single buffered']
    #allocation7 [shape = 's32[1]{0}', space=sflag, size = 0x4, scoped, tag = 'scoped memory for tpu_custom_call.1']
    #allocation8 [shape = 'u8[32768]{0}', space=vmem, size = 0x8000, scoped, tag = 'input window, operand 5, single buffered']
    #allocation9 [shape = 'u8[4096]{0}', space=vmem, size = 0x1000, scoped, tag = 'output window, operand 0, single buffered']
    %14 = vsyncpa [#allocation4], 0
    %15 = vsyncpa [#allocation7], 0
    %16 = vsyncpa [#allocation5], 0
    // Predicated region
    $region2: #{tpu_custom_call.1} parent=1 // pred_check
      _
    $region3: #{tpu_custom_call.1} parent=1 // pred_check_branch
      %18 = sbr.rel (0) target = $region5
    $region4: #{tpu_custom_call.1} parent=1 // pred_region
      %20 = vsyncadd [#allocation4], 0
      %s22 = sshll.u32 %s0, 4
      %s23 = int_to_ptr.hbm [resolvable:$true] %s22
      %s24 = sshll.u32 [#allocation3], 4
      %s25 = int_to_ptr.vmem [resolvable:$true] %s24
      %27 = dma.hbm_to_vmem [thread:$0]  %s23, 64, %s25, [#allocation4]
    $region5: #{tpu_custom_call.1} parent=1 // pred_fallthru
      _
    // Predicated region
    $region6: #{tpu_custom_call.1} parent=1 // pred_check
      _
    $region7: #{tpu_custom_call.1} parent=1 // pred_check_branch
      %29 = sbr.rel (0) target = $region9
    $region8: #{tpu_custom_call.1} parent=1 // pred_region
      %31 = vsyncadd [#allocation7], 0
      %s32 = sshll.u32 %s1, 4
      %s33 = int_to_ptr.hbm [resolvable:$true] %s32
      %s34 = sshll.u32 [#allocation6], 4
      %s35 = int_to_ptr.vmem [resolvable:$true] %s34
      %40 = dma.hbm_to_vmem [thread:$0]  %s33, 256, %s35, [#allocation7], 64, 64, 4
    $region9: #{tpu_custom_call.1} parent=1 // pred_fallthru
      _
    // Predicated region
    $region10: #{tpu_custom_call.1} parent=1 // pred_check
      _
    $region11: #{tpu_custom_call.1} parent=1 // pred_check_branch
      %42 = sbr.rel (0) target = $region13
    $region12: #{tpu_custom_call.1} parent=1 // pred_region
      _
    $region13: #{tpu_custom_call.1} parent=1 // pred_fallthru
      _
    // Predicated region
    $region14: #{tpu_custom_call.1} parent=1 // pred_check
      _
    $region15: #{tpu_custom_call.1} parent=1 // pred_check_branch
      %44 = sbr.rel (0) target = $region17
    $region16: #{tpu_custom_call.1} parent=1 // pred_region
      _
    $region17: #{tpu_custom_call.1} parent=1 // pred_fallthru
      _
    // Predicated region
    $region18: #{tpu_custom_call.1} parent=1 // pred_check
      _
    $region19: #{tpu_custom_call.1} parent=1 // pred_check_branch
      %46 = sbr.rel (0) target = $region21
    $region20: #{tpu_custom_call.1} parent=1 // pred_region
      _
    $region21: #{tpu_custom_call.1} parent=1 // pred_fallthru
      _
    // Predicated region
    $region22: #{tpu_custom_call.1} parent=1 // pred_check
      _
    $region23: #{tpu_custom_call.1} parent=1 // pred_check_branch
      %48 = sbr.rel (0) target = $region25
    $region24: #{tpu_custom_call.1} parent=1 // pred_region
      %50 = vsyncadd [#allocation7], 0
      %s51 = sshll.u32 %s5, 4
      %s52 = int_to_ptr.hbm [resolvable:$true] %s51
      %s53 = sshll.u32 [#allocation8], 4
      %s54 = int_to_ptr.vmem [resolvable:$true] %s53
      %59 = dma.hbm_to_vmem [thread:$0]  %s52, 1024, %s54, [#allocation7], 64, 64, 4
    $region25: #{tpu_custom_call.1} parent=1 // pred_fallthru
      _
    // Predicated region
    $region26: #{tpu_custom_call.1} parent=1 // pred_check
      _
    $region27: #{tpu_custom_call.1} parent=1 // pred_check_branch
      %61 = sbr.rel (0) target = $region29
    $region28: #{tpu_custom_call.1} parent=1 // pred_region
      _
    $region29: #{tpu_custom_call.1} parent=1 // pred_fallthru
      _
    // Predicated region
    $region30: #{tpu_custom_call.1} parent=1 // pred_check
      _
    $region31: #{tpu_custom_call.1} parent=1 // pred_check_branch
      %63 = sbr.rel (0) target = $region33
    $region32: #{tpu_custom_call.1} parent=1 // pred_region
      _
    $region33: #{tpu_custom_call.1} parent=1 // pred_fallthru
      _
    // Predicated region
    $region34: #{tpu_custom_call.1} parent=1 // pred_check
      _
    $region35: #{tpu_custom_call.1} parent=1 // pred_check_branch
      %65 = sbr.rel (0) target = $region37
    $region36: #{tpu_custom_call.1} parent=1 // pred_region
      _
    $region37: #{tpu_custom_call.1} parent=1 // pred_fallthru
      _
    // Predicated region
    $region38: #{tpu_custom_call.1} parent=1 // pred_check
      _
    $region39: #{tpu_custom_call.1} parent=1 // pred_check_branch
      %67 = sbr.rel (0) target = $region41
    $region40: #{tpu_custom_call.1} parent=1 // pred_region
      %69 = dma.done [#allocation4], 64
    $region41: #{tpu_custom_call.1} parent=1 // pred_fallthru
      _
    // Predicated region
    $region42: #{tpu_custom_call.1} parent=1 // pred_check
      _
    $region43: #{tpu_custom_call.1} parent=1 // pred_check_branch
      %71 = sbr.rel (0) target = $region45
    $region44: #{tpu_custom_call.1} parent=1 // pred_region
      %73 = dma.done [#allocation7], 256
    $region45: #{tpu_custom_call.1} parent=1 // pred_fallthru
      _
    // Predicated region
    $region46: #{tpu_custom_call.1} parent=1 // pred_check
      _
    $region47: #{tpu_custom_call.1} parent=1 // pred_check_branch
      %75 = sbr.rel (0) target = $region49
    $region48: #{tpu_custom_call.1} parent=1 // pred_region
      %77 = dma.done [#allocation7], 1024
    $region49: #{tpu_custom_call.1} parent=1 // pred_fallthru
      _
    %p79 = scmp.eq.s32.totalorder 0, 0
    // Predicated region
    $region50: #{tpu_custom_call.1} parent=1 // pred_check
      %p80 = pneg %p79
    $region51: #{tpu_custom_call.1} parent=1 // pred_check_branch
      %82 = sbr.rel (%p80) target = $region53
    $region52: #{tpu_custom_call.1} parent=1 // pred_region
      %83 = vst [vmem:[#allocation2] sm:$0xff] 0.0
    $region53: #{tpu_custom_call.1} parent=1 // pred_fallthru
      _
    %v84 = vld [vmem:[#allocation3] sm:$0xf]
    %v85 = vld [vmem:[#allocation6] sm:$0xf]
    %v86 = vld [vmem:[#allocation6 + $0x4] sm:$0xf]
    %v87 = vld [vmem:[#allocation6 + $0x8] sm:$0xf]
    %v88 = vld [vmem:[#allocation6 + $0xc] sm:$0xf]
    %v89 = vld [vmem:[%s2] sm:$0x1]
    %v91 = vperm.slane %v89, 0
    %v97 = vunpack.c.l.b16 %v85
    %v98 = vunpack.c.l.b16 %v86
    %v99 = vunpack.c.l.b16 %v87
    %v100 = vunpack.c.l.b16 %v88
    %v101 = vpack.c.b16 %v98, %v97
    %v102 = vpack.c.b16 %v100, %v99
    %vm105 = vcmask 261120
    %v107 = vsel %vm105, %v84, 0
    %109 = vmatpush.bf16.msra.mxu0 0
    %110 = vmatpush.bf16.msra.mxu0 0
    %111 = vmatpush.bf16.msra.mxu0 0
    %112 = vmatpush.bf16.msra.mxu0 0
    %113 = vmatpush.bf16.msra.mxu0 0
    %114 = vmatpush.bf16.msra.mxu0 0
    %115 = vmatpush.bf16.msra.mxu0 %v102
    %116 = vmatpush.bf16.msra.mxu0 %v101
    %117 = vmatmul.bf16.gmra.mxu0 %v107
    %v118 = vpop.f32.mrf.mxu0
    %v119 = vadd.f32 %v91, %v118
    %v120 = vpop.f32.mrf.mxu0
    %121 = vdwg.mxu0
    %v122 = vmax.f32 %v119, 0.0
    %v123 = vrot.slane %v122, 4
    %v124 = vadd.f32 %v122, %v123
    %v125 = vrot.slane %v124, 2
    %v126 = vadd.f32 %v124, %v125
    %v127 = vrot.slane %v126, 1
    %v128 = vadd.f32 %v126, %v127
    %v129 = vrcp.pop 8.0
    %v130 = vmul.f32 8.0, %v129
    %v131 = vsub.f32 1.0, %v130
    %v132 = vmul.f32 %v129, %v131
    %v133 = vadd.f32 %v129, %v132
    %vm134 = vweird.f32 %v129
    %v135 = vsel %vm134, %v129, %v133
    %v136 = vmul.f32 %v128, %v135
    %v137 = vmul.f32 %v122, %v122
    %v138 = vrot.slane %v137, 4
    %v139 = vadd.f32 %v137, %v138
    %v140 = vrot.slane %v139, 2
    %v141 = vadd.f32 %v139, %v140
    %v142 = vrot.slane %v141, 1
    %v143 = vadd.f32 %v141, %v142
    %v144 = vmul.f32 %v143, %v135
    %v145 = vmul.f32 %v136, %v136
    %v146 = vsub.f32 %v144, %v145
    %v147 = vld [vmem:[%s3] sm:$0x1]
    %v148 = vadd.f32 %v146, 1e-05
    %v149 = vrsqrt.pop %v148
    %v150 = vmul.f32 %v149, %v148
    %v151 = vmul.f32 %v150, %v149
    %v152 = vmul.f32 0.5, %v151
    %v153 = vsub.f32 1.5, %v152
    %v154 = vmul.f32 %v149, %v153
    %vm155 = vweird.f32 %v148
    %vm156 = vweird.f32 %v149
    %vm157 = vmor %vm155, %vm156
    %v158 = vsel %vm157, %v149, %v154
    %v159 = vmul.f32 %v147, %v158
    %v160 = vld [vmem:[%s4] sm:$0x1]
    %v161 = vmul.f32 %v136, %v159
    %v162 = vsub.f32 %v160, %v161
    %v164 = vperm.slane %v159, 0
    %v166 = vmul.f32 %v122, %v164
    %v168 = vperm.slane %v162, 0
    %v170 = vadd.f32 %v166, %v168
    %v171 = vld [vmem:[#allocation2] sm:$0xff]
    %v172 = vpack.c.bf16 %v170, %v170
    %v173 = vld [vmem:[#allocation8] sm:$0xf]
    %v174 = vld [vmem:[#allocation8 + $0x4] sm:$0xf]
    %v175 = vld [vmem:[#allocation8 + $0x8] sm:$0xf]
    %v176 = vld [vmem:[#allocation8 + $0xc] sm:$0xf]
    %v177 = vld [vmem:[#allocation8 + $0x10] sm:$0xf]
    %v178 = vld [vmem:[#allocation8 + $0x14] sm:$0xf]
    %v179 = vld [vmem:[#allocation8 + $0x18] sm:$0xf]
    %v180 = vld [vmem:[#allocation8 + $0x1c] sm:$0xf]
    %v181 = vld [vmem:[#allocation8 + $0x20] sm:$0xf]
    %v182 = vld [vmem:[#allocation8 + $0x24] sm:$0xf]
    %v183 = vld [vmem:[#allocation8 + $0x28] sm:$0xf]
    %v184 = vld [vmem:[#allocation8 + $0x2c] sm:$0xf]
    %v185 = vld [vmem:[#allocation8 + $0x30] sm:$0xf]
    %v186 = vld [vmem:[#allocation8 + $0x34] sm:$0xf]
    %v187 = vld [vmem:[#allocation8 + $0x38] sm:$0xf]
    %v188 = vld [vmem:[#allocation8 + $0x3c] sm:$0xf]
    %v205 = vunpack.c.l.b16 %v173
    %v206 = vunpack.c.l.b16 %v174
    %v207 = vunpack.c.l.b16 %v175
    %v208 = vunpack.c.l.b16 %v176
    %v209 = vunpack.c.l.b16 %v177
    %v210 = vunpack.c.l.b16 %v178
    %v211 = vunpack.c.l.b16 %v179
    %v212 = vunpack.c.l.b16 %v180
    %v213 = vunpack.c.l.b16 %v181
    %v214 = vunpack.c.l.b16 %v182
    %v215 = vunpack.c.l.b16 %v183
    %v216 = vunpack.c.l.b16 %v184
    %v217 = vunpack.c.l.b16 %v185
    %v218 = vunpack.c.l.b16 %v186
    %v219 = vunpack.c.l.b16 %v187
    %v220 = vunpack.c.l.b16 %v188
    %v221 = vpack.c.b16 %v206, %v205
    %v222 = vpack.c.b16 %v208, %v207
    %v223 = vpack.c.b16 %v210, %v209
    %v224 = vpack.c.b16 %v212, %v211
    %v225 = vpack.c.b16 %v214, %v213
    %v226 = vpack.c.b16 %v216, %v215
    %v227 = vpack.c.b16 %v218, %v217
    %v228 = vpack.c.b16 %v220, %v219
    %237 = vmatpush.bf16.msra.mxu0 %v228
    %238 = vmatpush.bf16.msra.mxu0 %v227
    %239 = vmatpush.bf16.msra.mxu0 %v226
    %240 = vmatpush.bf16.msra.mxu0 %v225
    %241 = vmatpush.bf16.msra.mxu0 %v224
    %242 = vmatpush.bf16.msra.mxu0 %v223
    %243 = vmatpush.bf16.msra.mxu0 %v222
    %244 = vmatpush.bf16.msra.mxu0 %v221
    %245 = vmatmul.bf16.gmra.mxu0 %v172
    %v246 = vpop.f32.mrf.mxu0
    %v247 = vadd.f32 0.0, %v246
    %v248 = vpop.f32.mrf.mxu0
    %249 = vdwg.mxu0
    %v250 = vadd.f32 %v171, %v247
    %251 = vst [vmem:[#allocation2] sm:$0xff] %v250
    // Predicated region
    $region54: #{tpu_custom_call.1} parent=1 // pred_check
      %p252 = pneg %p79
    $region55: #{tpu_custom_call.1} parent=1 // pred_check_branch
      %254 = sbr.rel (%p252) target = $region57
    $region56: #{tpu_custom_call.1} parent=1 // pred_region
      %v255 = vld [vmem:[#allocation2] sm:$0xff]
      %v256 = vld [vmem:[%s6] sm:$0x1]
      %v258 = vperm.slane %v256, 0
      %v260 = vadd.f32 %v255, %v258
      %v261 = vmax.f32 %v260, 0.0
      %v262 = vrot.slane %v261, 4
      %v263 = vadd.f32 %v261, %v262
      %v264 = vrot.slane %v263, 2
      %v265 = vadd.f32 %v263, %v264
      %v266 = vrot.slane %v265, 1
      %v267 = vadd.f32 %v265, %v266
      %v268 = vmul.f32 %v267, %v135
      %v269 = vmul.f32 %v261, %v261
      %v270 = vrot.slane %v269, 4
      %v271 = vadd.f32 %v269, %v270
      %v272 = vrot.slane %v271, 2
      %v273 = vadd.f32 %v271, %v272
      %v274 = vrot.slane %v273, 1
      %v275 = vadd.f32 %v273, %v274
      %v276 = vmul.f32 %v275, %v135
      %v277 = vmul.f32 %v268, %v268
      %v278 = vsub.f32 %v276, %v277
      %v279 = vld [vmem:[%s7] sm:$0x1]
      %v280 = vadd.f32 %v278, 1e-05
      %v281 = vrsqrt.pop %v280
      %v282 = vmul.f32 %v281, %v280
      %v283 = vmul.f32 %v282, %v281
      %v284 = vmul.f32 0.5, %v283
      %v285 = vsub.f32 1.5, %v284
      %v286 = vmul.f32 %v281, %v285
      %vm287 = vweird.f32 %v280
      %vm288 = vweird.f32 %v281
      %vm289 = vmor %vm287, %vm288
      %v290 = vsel %vm289, %v281, %v286
      %v291 = vmul.f32 %v279, %v290
      %v292 = vld [vmem:[%s8] sm:$0x1]
      %v293 = vmul.f32 %v268, %v291
      %v294 = vsub.f32 %v292, %v293
      %v296 = vperm.slane %v291, 0
      %v298 = vmul.f32 %v261, %v296
      %v300 = vperm.slane %v294, 0
      %v302 = vadd.f32 %v298, %v300
      %v303 = vsub.f32 0.0, %v302
      %v304 = vmul.f32 %v303, 1.442695
      %v305 = vpow.pop %v304
      %v306 = vadd.f32 %v305, 1.0
      %v307 = vrcp.pop %v306
      %308 = vst [vmem:[#allocation9] sm:$0xff] %v307
    $region57: #{tpu_custom_call.1} parent=1 // pred_fallthru
      _
    // Predicated region
    $region58: #{tpu_custom_call.1} parent=1 // pred_check
      _
    $region59: #{tpu_custom_call.1} parent=1 // pred_check_branch
      %310 = sbr.rel (0) target = $region61
    $region60: #{tpu_custom_call.1} parent=1 // pred_region
      %312 = vsyncadd [#allocation5], 0
      %s314 = sshll.u32 [#allocation9], 4
      %s315 = int_to_ptr.vmem [resolvable:$true] %s314
      %s316 = sshll.u32 %s9, 4
      %s317 = int_to_ptr.hbm [resolvable:$true] %s316
      %319 = dma.vmem_to_hbm [thread:$0]  %s315, 128, %s317, [#allocation5]
    $region61: #{tpu_custom_call.1} parent=1 // pred_fallthru
      _
    // Predicated region
    $region62: #{tpu_custom_call.1} parent=1 // pred_check
      _
    $region63: #{tpu_custom_call.1} parent=1 // pred_check_branch
      %321 = sbr.rel (0) target = $region65
    $region64: #{tpu_custom_call.1} parent=1 // pred_region
      %323 = dma.done [#allocation5], 128
    $region65: #{tpu_custom_call.1} parent=1 // pred_fallthru
      _
    %324 = vsyncpa [#allocation4], 1
    %325 = vsyncpa [#allocation7], 1
    %326 = vsyncpa [#allocation5], 1

</llo_original>
